<compile_context>
chip_gen: v5e
topology: v5e:2x2
jax: 0.10.0
libtpu: 0.0.40
codegen_flags: <defaults>
</compile_context>

<pallas_src>
import jax
import jax.numpy as jnp
from jax.experimental import pallas as pl
from jax.experimental.pallas import tpu as pltpu


def _pos_enc_kernel(x_ref, pos_ref, o_ref):
    # x_ref:   (tb, tn) or (tb, ts, E) tile of the activations
    # pos_ref: (1,  tn) or (1,  ts, E) tile of the positional embedding
    #          (broadcasts over the leading batch axis of the block)
    o_ref[...] = x_ref[...] + pos_ref[...]


def _vmem_limit_bytes(tile_bytes: int) -> int:
    # 2 inputs + 1 output, double-buffered, plus headroom; clamp to a range
    # that is safe on v7x (64 MiB physical) and generous on v5e/v6e (128 MiB).
    need = 6 * tile_bytes + (8 << 20)
    return int(min(max(32 << 20, need), 56 << 20))


def positional_encodering(x: jax.Array, pos_embedding: jax.Array,
                          *, target_tile_bytes: int = 2 * 1024 * 1024) -> jax.Array:
    """x: (B, S, E); pos_embedding: (1, S, E) -> (B, S, E)."""
    B, S, E = x.shape
    assert pos_embedding.shape == (1, S, E)

    dtype = x.dtype
    itemsize = jnp.dtype(dtype).itemsize
    pos = pos_embedding.astype(dtype)

    N = S * E
    # Sublane packing multiple: 8 for f32, 16 for bf16, 32 for int8/fp8.
    sub = max(8, 32 // itemsize)

    cost = pl.CostEstimate(
        flops=B * N,                                   # one add per element
        transcendentals=0,
        bytes_accessed=(2 * B * N + N) * itemsize,     # read x, write y, read pos once
    )

    # Use the flattened lane-dense path whenever the flattened lane axis can be
    # tiled at 128 granularity (or is small enough to be a single legal block).
    use_flat = (N % 128 == 0) or (N * itemsize <= target_tile_bytes)

    if use_flat:
        x2 = x.reshape(B, N)            # layout-preserving, free
        p2 = pos.reshape(1, N)

        # ---- lane tile ------------------------------------------------------
        if (N % 128 != 0) or (N * itemsize * sub <= target_tile_bytes):
            tn = N                                       # full lane extent (legal block)
        else:
            tn = max(128, ((target_tile_bytes // (itemsize * sub)) // 128) * 128)
            tn = min(tn, N)
        # ---- sublane (batch) tile -------------------------------------------
        if B <= sub:
            tb = B                                       # full dim (legal block)
        else:
            rows = max(sub, target_tile_bytes // (itemsize * tn))
            tb = min(B, max(sub, (rows // sub) * sub))

        tile_bytes = tb * tn * itemsize
        grid = (pl.cdiv(N, tn), pl.cdiv(B, tb))          # batch axis innermost

        out2 = pl.pallas_call(
            _pos_enc_kernel,
            out_shape=jax.ShapeDtypeStruct((B, N), dtype),
            grid_spec=pltpu.PrefetchScalarGridSpec(
                num_scalar_prefetch=0,
                grid=grid,
                in_specs=[
                    # streaming activations: advance with both grid axes
                    pl.BlockSpec((tb, tn), lambda j, i: (i, j)),
                    # positional embedding: constant along the inner batch axis
                    # -> DMA'd once per lane tile, VMEM-resident across batch
                    pl.BlockSpec((1, tn), lambda j, i: (0, j)),
                ],
                out_specs=pl.BlockSpec((tb, tn), lambda j, i: (i, j)),
            ),
            compiler_params=pltpu.CompilerParams(
                dimension_semantics=("parallel", "parallel"),
                vmem_limit_bytes=_vmem_limit_bytes(tile_bytes),
            ),
            cost_estimate=cost,
        )(x2, p2)
        return out2.reshape(B, S, E)

    # ---- 3-D fallback: tile over S, keep E as the full trailing dim ---------
    # (only used when S*E is large and not 128-divisible; E-as-full-dim blocks
    #  are always legal regardless of E's value)
    row_bytes = E * itemsize
    ts_budget = max(sub, ((target_tile_bytes // max(row_bytes, 1)) // sub) * sub)
    ts = S if S <= ts_budget else ts_budget              # full dim or multiple of 8/16/32
    tb = max(1, min(B, target_tile_bytes // max(ts * row_bytes, 1)))

    tile_bytes = tb * ts * E * itemsize
    grid = (pl.cdiv(S, ts), pl.cdiv(B, tb))              # batch axis innermost

    out = pl.pallas_call(
        _pos_enc_kernel,
        out_shape=jax.ShapeDtypeStruct((B, S, E), dtype),
        grid_spec=pltpu.PrefetchScalarGridSpec(
            num_scalar_prefetch=0,
            grid=grid,
            in_specs=[
                pl.BlockSpec((tb, ts, E), lambda j, i: (i, j, 0)),
                pl.BlockSpec((1, ts, E), lambda j, i: (0, j, 0)),
            ],
            out_specs=pl.BlockSpec((tb, ts, E), lambda j, i: (i, j, 0)),
        ),
        compiler_params=pltpu.CompilerParams(
            dimension_semantics=("parallel", "parallel"),
            vmem_limit_bytes=_vmem_limit_bytes(tile_bytes),
        ),
        cost_estimate=cost,
    )(x, pos)
    return out


if __name__ == "__main__":
    B, S, E = 2, 8, 32  # batch, seq_length, hidden_dim

    key = jax.random.PRNGKey(0)
    kx, kp = jax.random.split(key)

    x = jax.random.normal(kx, (B, S, E), dtype=jnp.float32)
    # nn.Parameter(torch.empty(1, S, E).normal_(std=0.02)) — deterministic synthetic init
    pos_embedding = 0.02 * jax.random.normal(kp, (1, S, E), dtype=jnp.float32)

    out = positional_encodering(x, pos_embedding)
    out = jax.block_until_ready(out)

    # correctness check against plain-JAX reference (broadcasting add)
    ref = x + pos_embedding
    assert out.shape == (B, S, E)
    assert out.dtype == x.dtype
    assert jnp.allclose(out, ref, atol=1e-6), "mismatch vs reference"

    print("KERNEL_OK")
</pallas_src>

<mosaic_0001>
module attributes {stable_mosaic.version = 11 : i64} {
  func.func @_pos_enc_kernel(%arg0: i32, %arg1: i32, %arg2: memref<2x256xf32, #tpu.memory_space<vmem>>, %arg3: memref<1x256xf32, #tpu.memory_space<vmem>>, %arg4: memref<2x256xf32, #tpu.memory_space<vmem>>) attributes {dimension_semantics = [#tpu.dimension_semantics<parallel>, #tpu.dimension_semantics<parallel>], iteration_bounds = array<i64: 1, 1>, scalar_prefetch = 0 : i64, scratch_operands = 0 : i64, tpu.core_type = #tpu.core_type<tc>, window_params = [{transform_indices = @transform_0, window_bounds = array<i64: 2, 256>}, {transform_indices = @transform_1, window_bounds = array<i64: 1, 256>}, {transform_indices = @transform_2, window_bounds = array<i64: 2, 256>}]} {
    %c0 = arith.constant 0 : index
    %c0_0 = arith.constant 0 : index
    %0 = vector.load %arg2[%c0, %c0_0] : memref<2x256xf32, #tpu.memory_space<vmem>>, vector<2x256xf32>
    %c0_1 = arith.constant 0 : index
    %c0_2 = arith.constant 0 : index
    %1 = vector.load %arg3[%c0_1, %c0_2] : memref<1x256xf32, #tpu.memory_space<vmem>>, vector<1x256xf32>
    %2 = vector.broadcast %1 : vector<1x256xf32> to vector<2x256xf32>
    %3 = arith.addf %0, %2 : vector<2x256xf32>
    %c0_3 = arith.constant 0 : index
    %c0_4 = arith.constant 0 : index
    %4 = vector.load %arg4[%c0_3, %c0_4] : memref<2x256xf32, #tpu.memory_space<vmem>>, vector<2x256xf32>
    tpu.vector_store %arg4[%c0_3, %c0_4], %3 {strides = array<i32>} : memref<2x256xf32, #tpu.memory_space<vmem>>, vector<2x256xf32>,
    return
  }
  func.func @transform_0(%arg0: i32, %arg1: i32) -> (i32, i32) {
    %c0_i32 = arith.constant 0 : i32
    return %arg1, %arg0 : i32, i32
  }
  func.func @transform_1(%arg0: i32, %arg1: i32) -> (i32, i32) {
    %c0_i32 = arith.constant 0 : i32
    %c0_i32_0 = arith.constant 0 : i32
    return %c0_i32, %arg0 : i32, i32
  }
  func.func @transform_2(%arg0: i32, %arg1: i32) -> (i32, i32) {
    %c0_i32 = arith.constant 0 : i32
    return %arg1, %arg0 : i32, i32
  }
}

</mosaic_0001>

<llo_original>
// kernel: tpu_custom_call.1
$region0: #{tpu_custom_call.1}
  #allocation0 [shape = 'u32[]', space=smem, size = 0x4, offset = 0x4, fixed_abs, tag = 'smem constant byte address 0x4 - core index']
  #allocation1 [shape = 'u32[72,128]{1,0:T(1,128)}', space=vmem, size = 0x9000, scoped, tag = 'internal scratch']
  %s0 = inlined_call_operand.hbm [shape: f32[2,256], index: 0, kind: input, shape index: {}]
  %s1 = inlined_call_operand.hbm [shape: f32[1,256], index: 1, kind: input, shape index: {}]
  %s2 = inlined_call_operand.hbm [shape: f32[2,256], index: 2, kind: output, shape index: {}]
  %s3 = sld [smem:[#allocation0]]
  $region26: #{tpu_custom_call.1} parent=0
    _
  %s5 = ssub.s32 1, %s3
  %s6 = scalar_select 0, %s5, %s3
  $region1: #{tpu_custom_call.1} parent=0
    #allocation2 [shape = 'u8[2048]{0}', space=vmem, size = 0x800, scoped, tag = 'input window, operand 0, single buffered']
    #allocation3 [shape = 's32[1]{0}', space=sflag, size = 0x4, scoped, tag = 'scoped memory for tpu_custom_call.1']
    #allocation4 [shape = 's32[1]{0}', space=sflag, size = 0x4, scoped, tag = 'scoped memory for tpu_custom_call.1']
    #allocation5 [shape = 'u8[1024]{0}', space=vmem, size = 0x400, scoped, tag = 'input window, operand 1, single buffered']
    #allocation6 [shape = 's32[1]{0}', space=sflag, size = 0x4, scoped, tag = 'scoped memory for tpu_custom_call.1']
    #allocation7 [shape = 'u8[2048]{0}', space=vmem, size = 0x800, scoped, tag = 'output window, operand 0, single buffered']
    %7 = vsyncpa [#allocation3], 0
    %8 = vsyncpa [#allocation6], 0
    %9 = vsyncpa [#allocation4], 0
    // Predicated region
    $region2: #{tpu_custom_call.1} parent=1 // pred_check
      _
    $region3: #{tpu_custom_call.1} parent=1 // pred_check_branch
      %11 = sbr.rel (0) target = $region5
    $region4: #{tpu_custom_call.1} parent=1 // pred_region
      %13 = vsyncadd [#allocation3], 0
      %s15 = sshll.u32 %s0, 4
      %s16 = int_to_ptr.hbm [resolvable:$true] %s15
      %s17 = sshll.u32 [#allocation2], 4
      %s18 = int_to_ptr.vmem [resolvable:$true] %s17
      %20 = dma.hbm_to_vmem [thread:$0]  %s16, 64, %s18, [#allocation3]
    $region5: #{tpu_custom_call.1} parent=1 // pred_fallthru
      _
    // Predicated region
    $region6: #{tpu_custom_call.1} parent=1 // pred_check
      _
    $region7: #{tpu_custom_call.1} parent=1 // pred_check_branch
      %22 = sbr.rel (0) target = $region9
    $region8: #{tpu_custom_call.1} parent=1 // pred_region
      %24 = vsyncadd [#allocation6], 0
      %s26 = sshll.u32 %s1, 4
      %s27 = int_to_ptr.hbm [resolvable:$true] %s26
      %s28 = sshll.u32 [#allocation5], 4
      %s29 = int_to_ptr.vmem [resolvable:$true] %s28
      %31 = dma.hbm_to_vmem [thread:$0]  %s27, 32, %s29, [#allocation6]
    $region9: #{tpu_custom_call.1} parent=1 // pred_fallthru
      _
    // Predicated region
    $region10: #{tpu_custom_call.1} parent=1 // pred_check
      _
    $region11: #{tpu_custom_call.1} parent=1 // pred_check_branch
      %33 = sbr.rel (0) target = $region13
    $region12: #{tpu_custom_call.1} parent=1 // pred_region
      %35 = dma.done [#allocation3], 64
    $region13: #{tpu_custom_call.1} parent=1 // pred_fallthru
      _
    // Predicated region
    $region14: #{tpu_custom_call.1} parent=1 // pred_check
      _
    $region15: #{tpu_custom_call.1} parent=1 // pred_check_branch
      %37 = sbr.rel (0) target = $region17
    $region16: #{tpu_custom_call.1} parent=1 // pred_region
      %39 = dma.done [#allocation6], 32
    $region17: #{tpu_custom_call.1} parent=1 // pred_fallthru
      _
    %v40 = vld [vmem:[#allocation2] sm:$0xf]
    %v41 = vld [vmem:[#allocation5] sm:$0x3]
    %v43 = vperm.slane %v41, 0
    %v44 = vperm.slane %v41, 1
    %v45 = vrot.slane %v44, 6
    %vm46 = vcmask 1041408
    %v47 = vsel %vm46, %v43, %v45
    %v49 = vadd.f32 %v40, %v47
    %50 = vst [vmem:[#allocation7] sm:$0xf] %v49
    // Predicated region
    $region18: #{tpu_custom_call.1} parent=1 // pred_check
      _
    $region19: #{tpu_custom_call.1} parent=1 // pred_check_branch
      %52 = sbr.rel (0) target = $region21
    $region20: #{tpu_custom_call.1} parent=1 // pred_region
      %54 = vsyncadd [#allocation4], 0
      %s56 = sshll.u32 [#allocation7], 4
      %s57 = int_to_ptr.vmem [resolvable:$true] %s56
      %s58 = sshll.u32 %s2, 4
      %s59 = int_to_ptr.hbm [resolvable:$true] %s58
      %61 = dma.vmem_to_hbm [thread:$0]  %s57, 64, %s59, [#allocation4]
    $region21: #{tpu_custom_call.1} parent=1 // pred_fallthru
      _
    // Predicated region
    $region22: #{tpu_custom_call.1} parent=1 // pred_check
      _
    $region23: #{tpu_custom_call.1} parent=1 // pred_check_branch
      %63 = sbr.rel (0) target = $region25
    $region24: #{tpu_custom_call.1} parent=1 // pred_region
      %65 = dma.done [#allocation4], 64
    $region25: #{tpu_custom_call.1} parent=1 // pred_fallthru
      _
    %66 = vsyncpa [#allocation3], 1
    %67 = vsyncpa [#allocation6], 1
    %68 = vsyncpa [#allocation4], 1

</llo_original>
